<compile_context>
chip_gen: v7x
topology: tpu7x:2x2x1
jax: 0.10.0
libtpu: 0.0.40
codegen_flags: <defaults>
</compile_context>

<pallas_src>
import jax
import jax.numpy as jnp
from jax.experimental import pallas as pl
from jax.experimental.pallas import tpu as pltpu

LEAKY_SLOPE = 0.05  # nn.LeakyReLU(alpha=0.05)


def _round_up(a, b):
    return (a + b - 1) // b * b


# --------------------------------------------------------------------------------------
# phase 1: projection + per-node attention logits
# --------------------------------------------------------------------------------------
def proj_kernel(x_ref, wt_ref, a1_ref, a2_ref, h0_ref, s1_ref, s2_ref):
    # h_0 = x @ W^T on the MXU (bf16 inputs, f32 accumulation).
    h0 = jnp.dot(x_ref[...], wt_ref[...], preferred_element_type=jnp.float32)  # [TR1, Hp]
    # Attention projections on the VPU (an [Hp,1] MXU matvec would idle >99% of the MXU).
    s1_ref[...] = jnp.sum(h0 * a1_ref[...], axis=-1, keepdims=True)            # [TR1, 1]
    s2_ref[...] = jnp.sum(h0 * a2_ref[...], axis=-1, keepdims=True)            # [TR1, 1]
    h0_ref[...] = h0.astype(h0_ref.dtype)                                      # bf16 out


# --------------------------------------------------------------------------------------
# phase 2: masked softmax + aggregation (rows parallel, columns reduced)
# --------------------------------------------------------------------------------------
def _make_attn_kernel(tc, h0_resident):
    def attn_kernel(adj_ref, s1_ref, s2_ref, h0_ref, out_ref, rowsum_ref, d_acc):
        k = pl.program_id(1)

        @pl.when(k == 0)
        def _():
            out_ref[...] = jnp.zeros_like(out_ref)
            d_acc[...] = jnp.zeros_like(d_acc)

        adj = adj_ref[...]                               # bf16 [TR, TC]; no f32 copy
        e = s1_ref[...] + s2_ref[...]                    # [TR,1] + [1,TC] -> [TR,TC] f32
        e = jnp.maximum(e, LEAKY_SLOPE * e)              # LeakyReLU(0.05), slope < 1
        # NOTE: exp without row-max subtraction, matching the module's semantics exactly.
        h_exp = jnp.where(adj != 0.0, jnp.exp(e), 0.0)   # mask = nonzero adjacency
        d_acc[...] += jnp.sum(h_exp, axis=1, keepdims=True)
        w = h_exp.astype(jnp.bfloat16) * adj             # (adj * exp) as bf16 MXU operand

        if h0_resident:
            start = pl.multiple_of(k * tc, tc)
            h0_blk = h0_ref[pl.ds(start, tc), :]         # slice the resident h0
        else:
            h0_blk = h0_ref[...]                         # streamed (TC, Hp) tile
        out_ref[...] += jnp.dot(w, h0_blk, preferred_element_type=jnp.float32)

        @pl.when(k == pl.num_programs(1) - 1)
        def _():
            d = d_acc[...]
            inv = pl.reciprocal(jnp.where(d == 0.0, 1.0, d), approx=True)
            out_ref[...] = out_ref[...] * inv            # normalize after the matmul
            rowsum_ref[...] = d

    return attn_kernel


def gat_layer(x, adj_vals, indices, W, a_w, a_b):
    """Pallas GAT forward. Returns (out [N, H], per-edge alpha [E])."""
    N, F = x.shape
    H = W.shape[0]
    Hp = _round_up(H, 128)   # lane-dense hidden dim (unmasked stores, filled MXU columns)

    # ---- tiling -----------------------------------------------------------------------
    if N <= 2048:
        NP = _round_up(N, 256)
        TC = NP                               # single column tile
        TR = 128 if NP <= 768 else 256        # keep >=2 (even) row tiles for v7x's 2 TCs
        TR1 = NP                              # phase 1: one big row tile
    else:
        NP = _round_up(N, 2048)
        TR, TC = 512, 2048                    # adj tile = 2 MiB bf16, double-buffered
        TR1 = 2048
    num_r, num_c = NP // TR, NP // TC

    # ---- pad inputs (cast to the narrow dtype BEFORE padding: one O(N^2) pass) --------
    xp = jnp.pad(x.astype(jnp.bfloat16), ((0, NP - N), (0, 0)))
    # TODO(synk): int8 adjacency streaming would halve the O(N^2) HBM traffic (biggest
    # win on v5e) but would truncate non-binary edge weights; bf16 kept for generality.
    adjp = jnp.pad(adj_vals.astype(jnp.bfloat16), ((0, NP - N), (0, NP - N)))
    wt = jnp.pad(W.T.astype(jnp.bfloat16), ((0, 0), (0, Hp - H)))                # [F, Hp]
    a1 = jnp.pad(a_w[:, :H].astype(jnp.float32), ((0, 0), (0, Hp - H)))          # [1, Hp]
    a2 = jnp.pad(a_w[:, H:2 * H].astype(jnp.float32), ((0, 0), (0, Hp - H)))     # [1, Hp]

    # ---- phase 1: projection + per-node attention logits -----------------------------
    h0, s1, s2 = pl.pallas_call(
        proj_kernel,
        out_shape=(jax.ShapeDtypeStruct((NP, Hp), jnp.bfloat16),
                   jax.ShapeDtypeStruct((NP, 1), jnp.float32),
                   jax.ShapeDtypeStruct((NP, 1), jnp.float32)),
        grid_spec=pltpu.PrefetchScalarGridSpec(
            num_scalar_prefetch=0,
            grid=(NP // TR1,),
            in_specs=[
                pl.BlockSpec((TR1, F), lambda i: (i, 0)),   # x tile (F is the full dim)
                pl.BlockSpec((F, Hp), lambda i: (0, 0)),    # W^T (resident)
                pl.BlockSpec((1, Hp), lambda i: (0, 0)),    # a1
                pl.BlockSpec((1, Hp), lambda i: (0, 0)),    # a2
            ],
            out_specs=(pl.BlockSpec((TR1, Hp), lambda i: (i, 0)),
                       pl.BlockSpec((TR1, 1), lambda i: (i, 0)),
                       pl.BlockSpec((TR1, 1), lambda i: (i, 0))),
        ),
        compiler_params=pltpu.CompilerParams(dimension_semantics=("parallel",)),
    )(xp, wt, a1, a2)

    # Fold the scalar bias into s1 once; relayout s2 to a row vector.  Both are O(N)
    # XLA glue (negligible vs the O(N^2) adj stream) and avoid an in-kernel transpose.
    s1 = s1 + a_b.astype(jnp.float32).reshape(1, 1)
    s2_row = s2.reshape(1, NP)

    # ---- phase 2: masked softmax + aggregation ----------------------------------------
    # Keep h0 fully resident in VMEM unless it is too large (budgeted for v7x's 64 MiB,
    # leaving room for the double-buffered adj stream and the f32 out accumulator).
    h0_resident = NP * Hp * 2 <= 8 * 1024 * 1024
    if h0_resident:
        h0_spec = pl.BlockSpec((NP, Hp), lambda i, k: (0, 0))     # one DMA, resident
    else:
        h0_spec = pl.BlockSpec((TC, Hp), lambda i, k: (k, 0))     # fallback: stream

    out_p, rowsum_p = pl.pallas_call(
        _make_attn_kernel(TC, h0_resident),
        out_shape=(jax.ShapeDtypeStruct((NP, Hp), jnp.float32),
                   jax.ShapeDtypeStruct((NP, 1), jnp.float32)),
        grid_spec=pltpu.PrefetchScalarGridSpec(
            num_scalar_prefetch=0,
            grid=(num_r, num_c),
            in_specs=[
                pl.BlockSpec((TR, TC), lambda i, k: (i, k)),      # adj tile (bf16 stream)
                pl.BlockSpec((TR, 1), lambda i, k: (i, 0)),       # s1 (+bias) column
                pl.BlockSpec((1, TC), lambda i, k: (0, k)),       # s2 row vector
                h0_spec,                                          # h0 (resident/streamed)
            ],
            out_specs=(pl.BlockSpec((TR, Hp), lambda i, k: (i, 0)),   # resident accumulator
                       pl.BlockSpec((TR, 1), lambda i, k: (i, 0))),   # row-sum (denominator)
            scratch_shapes=[pltpu.VMEM((TR, 1), jnp.float32)],
        ),
        compiler_params=pltpu.CompilerParams(
            dimension_semantics=("parallel", "arbitrary"),
            vmem_limit_bytes=48 * 1024 * 1024),
    )(adjp, s1, s2_row, h0)

    out = out_p[:N, :H]
    rowsum = rowsum_p[:N, 0]

    # ---- per-edge attention coefficients: O(E) gather, no dense [N,N] writeback -------
    # TODO(synk): torch.sparse coalesce() + the E-length edge gather have no clean Pallas
    # equivalent; kept as O(E) JAX glue (row-major edge order matches coalesce()).
    s1e = s1[:N, 0][indices[0]]
    s2e = s2[:N, 0][indices[1]]
    logit = s1e + s2e
    logit = jnp.where(logit > 0, logit, LEAKY_SLOPE * logit)
    alpha = jnp.exp(logit) / rowsum[indices[0]]
    return out, alpha


def gat_reference(x, adj_vals, indices, W, a_w, a_b):
    """Plain-JAX f32 reference mirroring the PyTorch forward on an edge list."""
    h0 = x @ W.T
    h_i = h0[indices[0]]
    h_j = h0[indices[1]]
    h = jnp.concatenate([h_i, h_j], axis=1)
    s = (h @ a_w.T + a_b)[:, 0]
    s = jnp.where(s > 0, s, LEAKY_SLOPE * s)
    h_exp = jnp.exp(s)
    N = x.shape[0]
    h_sum = jnp.zeros((N,), jnp.float32).at[indices[0]].add(h_exp)
    alpha = h_exp / h_sum[indices[0]]
    edge_vals = adj_vals[indices[0], indices[1]]
    attn = jnp.zeros((N, N), jnp.float32).at[indices[0], indices[1]].set(edge_vals * alpha)
    out = attn @ h0
    return out, alpha


if __name__ == "__main__":
    N_NODES, N_FEAT, N_HIDDEN = 16, 32, 32

    key = jax.random.PRNGKey(0)
    kx, kadj, kw, ka, kb = jax.random.split(key, 5)

    # node features
    x = jax.random.normal(kx, (N_NODES, N_FEAT), dtype=jnp.float32)

    # random symmetric binary adjacency with self-loops (every node has edges)
    rand = jax.random.uniform(kadj, (N_NODES, N_NODES))
    adj_mask = ((rand + rand.T) * 0.5 < 0.3).astype(jnp.float32)
    adj_mask = jnp.maximum(adj_mask, jnp.eye(N_NODES, dtype=jnp.float32))
    adj_vals = adj_mask  # binary edge values, as in the torch.sparse adjacency

    # coalesced edge indices (row-major sorted, same as torch coalesce())
    rows, cols = jnp.nonzero(adj_mask)
    indices = jnp.stack([rows, cols], axis=0)

    # deterministic parameter init (shapes from nn.Linear in __init__)
    W = 0.1 * jax.random.normal(kw, (N_HIDDEN, N_FEAT), dtype=jnp.float32)     # fc.weight
    a_w = 0.1 * jax.random.normal(ka, (1, 2 * N_HIDDEN), dtype=jnp.float32)    # a.weight
    a_b = 0.1 * jax.random.normal(kb, (1,), dtype=jnp.float32)                 # a.bias

    out, alpha = gat_layer(x, adj_vals, indices, W, a_w, a_b)
    out, alpha = jax.block_until_ready((out, alpha))

    out_ref, alpha_ref = gat_reference(x, adj_vals, indices, W, a_w, a_b)
    assert out.shape == (N_NODES, N_HIDDEN) and alpha.shape == (rows.shape[0],)
    # bf16 MXU operands + approx reciprocal vs an f32 reference -> looser tolerance
    assert jnp.allclose(out, out_ref, atol=2e-2, rtol=2e-2), \
        float(jnp.max(jnp.abs(out - out_ref)))
    assert jnp.allclose(alpha, alpha_ref, atol=2e-2, rtol=2e-2), \
        float(jnp.max(jnp.abs(alpha - alpha_ref)))

    print("KERNEL_OK")
</pallas_src>

<mosaic_0001>
module attributes {stable_mosaic.version = 11 : i64} {
  func.func @proj_kernel(%arg0: i32, %arg1: memref<256x32xbf16, #tpu.memory_space<vmem>>, %arg2: memref<32x128xbf16, #tpu.memory_space<vmem>>, %arg3: memref<1x128xf32, #tpu.memory_space<vmem>>, %arg4: memref<1x128xf32, #tpu.memory_space<vmem>>, %arg5: memref<256x128xbf16, #tpu.memory_space<vmem>>, %arg6: memref<256x1xf32, #tpu.memory_space<vmem>>, %arg7: memref<256x1xf32, #tpu.memory_space<vmem>>) attributes {dimension_semantics = [#tpu.dimension_semantics<parallel>], iteration_bounds = array<i64: 1>, scalar_prefetch = 0 : i64, scratch_operands = 0 : i64, tpu.core_type = #tpu.core_type<tc>, window_params = [{transform_indices = @transform_0, window_bounds = array<i64: 256, 32>}, {pipeline_mode = #tpu.pipeline_mode<synchronous>, transform_indices = @transform_1, window_bounds = array<i64: 32, 128>}, {pipeline_mode = #tpu.pipeline_mode<synchronous>, transform_indices = @transform_2, window_bounds = array<i64: 1, 128>}, {pipeline_mode = #tpu.pipeline_mode<synchronous>, transform_indices = @transform_3, window_bounds = array<i64: 1, 128>}, {transform_indices = @transform_4, window_bounds = array<i64: 256, 128>}, {transform_indices = @transform_5, window_bounds = array<i64: 256, 1>}, {transform_indices = @transform_6, window_bounds = array<i64: 256, 1>}]} {
    %c0 = arith.constant 0 : index
    %c0_0 = arith.constant 0 : index
    %0 = vector.load %arg1[%c0, %c0_0] : memref<256x32xbf16, #tpu.memory_space<vmem>>, vector<256x32xbf16>
    %c0_1 = arith.constant 0 : index
    %c0_2 = arith.constant 0 : index
    %1 = vector.load %arg2[%c0_1, %c0_2] : memref<32x128xbf16, #tpu.memory_space<vmem>>, vector<32x128xbf16>
    %cst = arith.constant dense<0.000000e+00> : vector<256x128xf32>
    %2 = tpu.matmul %0, %1, %cst {dimension_numbers = #tpu.dot_dimension_numbers<[1], [0], [0], [1], [0, 0, 1, 1], [], []>} : vector<256x32xbf16>, vector<32x128xbf16>, vector<256x128xf32> -> vector<256x128xf32>
    %c0_3 = arith.constant 0 : index
    %c0_4 = arith.constant 0 : index
    %3 = vector.load %arg3[%c0_3, %c0_4] : memref<1x128xf32, #tpu.memory_space<vmem>>, vector<1x128xf32>
    %4 = vector.broadcast %3 : vector<1x128xf32> to vector<256x128xf32>
    %5 = arith.mulf %2, %4 : vector<256x128xf32>
    %cst_5 = arith.constant dense<0.000000e+00> : vector<256xf32>
    %6 = vector.multi_reduction <add>, %5, %cst_5 [1] : vector<256x128xf32> to vector<256xf32>
    %7 = vector.shape_cast %6 : vector<256xf32> to vector<256x1xf32>
    %c0_6 = arith.constant 0 : index
    %c0_7 = arith.constant 0 : index
    %8 = vector.load %arg6[%c0_6, %c0_7] : memref<256x1xf32, #tpu.memory_space<vmem>>, vector<256x1xf32>
    tpu.vector_store %arg6[%c0_6, %c0_7], %7 {strides = array<i32>} : memref<256x1xf32, #tpu.memory_space<vmem>>, vector<256x1xf32>,
    %c0_8 = arith.constant 0 : index
    %c0_9 = arith.constant 0 : index
    %9 = vector.load %arg4[%c0_8, %c0_9] : memref<1x128xf32, #tpu.memory_space<vmem>>, vector<1x128xf32>
    %10 = vector.broadcast %9 : vector<1x128xf32> to vector<256x128xf32>
    %11 = arith.mulf %2, %10 : vector<256x128xf32>
    %cst_10 = arith.constant dense<0.000000e+00> : vector<256xf32>
    %12 = vector.multi_reduction <add>, %11, %cst_10 [1] : vector<256x128xf32> to vector<256xf32>
    %13 = vector.shape_cast %12 : vector<256xf32> to vector<256x1xf32>
    %c0_11 = arith.constant 0 : index
    %c0_12 = arith.constant 0 : index
    %14 = vector.load %arg7[%c0_11, %c0_12] : memref<256x1xf32, #tpu.memory_space<vmem>>, vector<256x1xf32>
    tpu.vector_store %arg7[%c0_11, %c0_12], %13 {strides = array<i32>} : memref<256x1xf32, #tpu.memory_space<vmem>>, vector<256x1xf32>,
    %15 = arith.truncf %2 : vector<256x128xf32> to vector<256x128xbf16>
    %c0_13 = arith.constant 0 : index
    %c0_14 = arith.constant 0 : index
    %16 = vector.load %arg5[%c0_13, %c0_14] : memref<256x128xbf16, #tpu.memory_space<vmem>>, vector<256x128xbf16>
    tpu.vector_store %arg5[%c0_13, %c0_14], %15 {strides = array<i32>} : memref<256x128xbf16, #tpu.memory_space<vmem>>, vector<256x128xbf16>,
    return
  }
  func.func @transform_0(%arg0: i32) -> (i32, i32) {
    %c0_i32 = arith.constant 0 : i32
    %c0_i32_0 = arith.constant 0 : i32
    return %arg0, %c0_i32 : i32, i32
  }
  func.func @transform_1(%arg0: i32) -> (i32, i32) {
    %c0_i32 = arith.constant 0 : i32
    %c0_i32_0 = arith.constant 0 : i32
    %c0_i32_1 = arith.constant 0 : i32
    return %c0_i32, %c0_i32_0 : i32, i32
  }
  func.func @transform_2(%arg0: i32) -> (i32, i32) {
    %c0_i32 = arith.constant 0 : i32
    %c0_i32_0 = arith.constant 0 : i32
    %c0_i32_1 = arith.constant 0 : i32
    return %c0_i32, %c0_i32_0 : i32, i32
  }
  func.func @transform_3(%arg0: i32) -> (i32, i32) {
    %c0_i32 = arith.constant 0 : i32
    %c0_i32_0 = arith.constant 0 : i32
    %c0_i32_1 = arith.constant 0 : i32
    return %c0_i32, %c0_i32_0 : i32, i32
  }
  func.func @transform_4(%arg0: i32) -> (i32, i32) {
    %c0_i32 = arith.constant 0 : i32
    %c0_i32_0 = arith.constant 0 : i32
    return %arg0, %c0_i32 : i32, i32
  }
  func.func @transform_5(%arg0: i32) -> (i32, i32) {
    %c0_i32 = arith.constant 0 : i32
    %c0_i32_0 = arith.constant 0 : i32
    return %arg0, %c0_i32 : i32, i32
  }
  func.func @transform_6(%arg0: i32) -> (i32, i32) {
    %c0_i32 = arith.constant 0 : i32
    %c0_i32_0 = arith.constant 0 : i32
    return %arg0, %c0_i32 : i32, i32
  }
}

</mosaic_0001>

<llo_original>
// kernel: tpu_custom_call.1
$region0: #{tpu_custom_call.1}
  #allocation0 [shape = 'u32[]', space=smem, size = 0x4, offset = 0x4, fixed_abs, tag = 'smem constant byte address 0x4 - core index']
  #allocation1 [shape = 'u32[144,128]{1,0:T(1,128)}', space=vmem, size = 0x12000, scoped, tag = 'internal scratch']
  %s0 = inlined_call_operand.vmem [shape: bf16[256,32], index: 0, kind: input, shape index: {}]
  %s1 = inlined_call_operand.vmem [shape: bf16[32,128], index: 1, kind: input, shape index: {}]
  %s2 = inlined_call_operand.vmem [shape: f32[1,128], index: 2, kind: input, shape index: {}]
  %s3 = inlined_call_operand.vmem [shape: f32[1,128], index: 3, kind: input, shape index: {}]
  %s4 = inlined_call_operand.hbm [shape: bf16[256,128], index: 4, kind: output, shape index: {0}]
  %s5 = inlined_call_operand.vmem [shape: f32[256,1], index: 5, kind: output, shape index: {1}]
  %s6 = inlined_call_operand.vmem [shape: f32[256,1], index: 6, kind: output, shape index: {2}]
  %7 = xla_tuple %s4, %s5, %s6
  %s8 = sld [smem:[#allocation0]]
  $region42: #{tpu_custom_call.1} parent=0
    _
  %s10 = ssub.s32 1, %s8
  %s11 = scalar_select 0, %s10, %s8
  $region1: #{tpu_custom_call.1} parent=0
    #allocation2 [shape = 'u8[65536]{0}', space=vmem, size = 0x10000, scoped, tag = 'output window, operand 0, single buffered']
    #allocation3 [shape = 's32[1]{0}', space=sflag, size = 0x4, scoped, tag = 'scoped memory for tpu_custom_call.1']
    %12 = vsyncpa [#allocation3], 0
    // Predicated region
    $region2: #{tpu_custom_call.1} parent=1 // pred_check
      _
    $region3: #{tpu_custom_call.1} parent=1 // pred_check_branch
      %14 = sbr.rel (0) target = $region5
    $region4: #{tpu_custom_call.1} parent=1 // pred_region
      _
    $region5: #{tpu_custom_call.1} parent=1 // pred_fallthru
      _
    // Predicated region
    $region6: #{tpu_custom_call.1} parent=1 // pred_check
      _
    $region7: #{tpu_custom_call.1} parent=1 // pred_check_branch
      %16 = sbr.rel (0) target = $region9
    $region8: #{tpu_custom_call.1} parent=1 // pred_region
      _
    $region9: #{tpu_custom_call.1} parent=1 // pred_fallthru
      _
    // Predicated region
    $region10: #{tpu_custom_call.1} parent=1 // pred_check
      _
    $region11: #{tpu_custom_call.1} parent=1 // pred_check_branch
      %18 = sbr.rel (0) target = $region13
    $region12: #{tpu_custom_call.1} parent=1 // pred_region
      _
    $region13: #{tpu_custom_call.1} parent=1 // pred_fallthru
      _
    // Predicated region
    $region14: #{tpu_custom_call.1} parent=1 // pred_check
      _
    $region15: #{tpu_custom_call.1} parent=1 // pred_check_branch
      %20 = sbr.rel (0) target = $region17
    $region16: #{tpu_custom_call.1} parent=1 // pred_region
      _
    $region17: #{tpu_custom_call.1} parent=1 // pred_fallthru
      _
    %v22 = vld [vmem:[%s0] sm:$0xf]
    %v23 = vld [vmem:[%s0 + $0x4] sm:$0xf]
    %v24 = vld [vmem:[%s0 + $0x8] sm:$0xf]
    %v25 = vld [vmem:[%s0 + $0xc] sm:$0xf]
    %v26 = vld [vmem:[%s0 + $0x10] sm:$0xf]
    %v27 = vld [vmem:[%s0 + $0x14] sm:$0xf]
    %v28 = vld [vmem:[%s0 + $0x18] sm:$0xf]
    %v29 = vld [vmem:[%s0 + $0x1c] sm:$0xf]
    %v30 = vld [vmem:[%s0 + $0x20] sm:$0xf]
    %v31 = vld [vmem:[%s0 + $0x24] sm:$0xf]
    %v32 = vld [vmem:[%s0 + $0x28] sm:$0xf]
    %v33 = vld [vmem:[%s0 + $0x2c] sm:$0xf]
    %v34 = vld [vmem:[%s0 + $0x30] sm:$0xf]
    %v35 = vld [vmem:[%s0 + $0x34] sm:$0xf]
    %v36 = vld [vmem:[%s0 + $0x38] sm:$0xf]
    %v37 = vld [vmem:[%s0 + $0x3c] sm:$0xf]
    %v38 = vld [vmem:[%s0 + $0x40] sm:$0xf]
    %v39 = vld [vmem:[%s0 + $0x44] sm:$0xf]
    %v40 = vld [vmem:[%s0 + $0x48] sm:$0xf]
    %v41 = vld [vmem:[%s0 + $0x4c] sm:$0xf]
    %v42 = vld [vmem:[%s0 + $0x50] sm:$0xf]
    %v43 = vld [vmem:[%s0 + $0x54] sm:$0xf]
    %v44 = vld [vmem:[%s0 + $0x58] sm:$0xf]
    %v45 = vld [vmem:[%s0 + $0x5c] sm:$0xf]
    %v46 = vld [vmem:[%s0 + $0x60] sm:$0xf]
    %v47 = vld [vmem:[%s0 + $0x64] sm:$0xf]
    %v48 = vld [vmem:[%s0 + $0x68] sm:$0xf]
    %v49 = vld [vmem:[%s0 + $0x6c] sm:$0xf]
    %v50 = vld [vmem:[%s0 + $0x70] sm:$0xf]
    %v51 = vld [vmem:[%s0 + $0x74] sm:$0xf]
    %v52 = vld [vmem:[%s0 + $0x78] sm:$0xf]
    %v53 = vld [vmem:[%s0 + $0x7c] sm:$0xf]
    %v54 = vld [vmem:[%s1] sm:$0xf]
    %v55 = vld [vmem:[%s1 + $0x4] sm:$0xf]
    %v56 = vld [vmem:[%s1 + $0x8] sm:$0xf]
    %v57 = vld [vmem:[%s1 + $0xc] sm:$0xf]
    %v90 = vunpack.c.l.b16 %v22
    %v91 = vunpack.c.l.b16 %v23
    %v92 = vunpack.c.l.b16 %v24
    %v93 = vunpack.c.l.b16 %v25
    %v94 = vunpack.c.l.b16 %v26
    %v95 = vunpack.c.l.b16 %v27
    %v96 = vunpack.c.l.b16 %v28
    %v97 = vunpack.c.l.b16 %v29
    %v98 = vunpack.c.l.b16 %v30
    %v99 = vunpack.c.l.b16 %v31
    %v100 = vunpack.c.l.b16 %v32
    %v101 = vunpack.c.l.b16 %v33
    %v102 = vunpack.c.l.b16 %v34
    %v103 = vunpack.c.l.b16 %v35
    %v104 = vunpack.c.l.b16 %v36
    %v105 = vunpack.c.l.b16 %v37
    %v106 = vunpack.c.l.b16 %v38
    %v107 = vunpack.c.l.b16 %v39
    %v108 = vunpack.c.l.b16 %v40
    %v109 = vunpack.c.l.b16 %v41
    %v110 = vunpack.c.l.b16 %v42
    %v111 = vunpack.c.l.b16 %v43
    %v112 = vunpack.c.l.b16 %v44
    %v113 = vunpack.c.l.b16 %v45
    %v114 = vunpack.c.l.b16 %v46
    %v115 = vunpack.c.l.b16 %v47
    %v116 = vunpack.c.l.b16 %v48
    %v117 = vunpack.c.l.b16 %v49
    %v118 = vunpack.c.l.b16 %v50
    %v119 = vunpack.c.l.b16 %v51
    %v120 = vunpack.c.l.b16 %v52
    %v121 = vunpack.c.l.b16 %v53
    %v122 = vpack.c.b16 %v91, %v90
    %v123 = vpack.c.b16 %v93, %v92
    %v124 = vpack.c.b16 %v95, %v94
    %v125 = vpack.c.b16 %v97, %v96
    %v126 = vpack.c.b16 %v99, %v98
    %v127 = vpack.c.b16 %v101, %v100
    %v128 = vpack.c.b16 %v103, %v102
    %v129 = vpack.c.b16 %v105, %v104
    %v130 = vpack.c.b16 %v107, %v106
    %v131 = vpack.c.b16 %v109, %v108
    %v132 = vpack.c.b16 %v111, %v110
    %v133 = vpack.c.b16 %v113, %v112
    %v134 = vpack.c.b16 %v115, %v114
    %v135 = vpack.c.b16 %v117, %v116
    %v136 = vpack.c.b16 %v119, %v118
    %v137 = vpack.c.b16 %v121, %v120
    %v142 = vunpack.c.l.b16 %v54
    %v143 = vunpack.c.l.b16 %v55
    %v144 = vunpack.c.l.b16 %v56
    %v145 = vunpack.c.l.b16 %v57
    %v146 = vpack.c.b16 %v143, %v142
    %v147 = vpack.c.b16 %v145, %v144
    %vm150 = vcmask 261120
    %v152 = vsel %vm150, %v122, 0
    %v155 = vsel %vm150, %v123, 0
    %v158 = vsel %vm150, %v124, 0
    %v161 = vsel %vm150, %v125, 0
    %v164 = vsel %vm150, %v126, 0
    %v167 = vsel %vm150, %v127, 0
    %v170 = vsel %vm150, %v128, 0
    %v173 = vsel %vm150, %v129, 0
    %v176 = vsel %vm150, %v130, 0
    %v179 = vsel %vm150, %v131, 0
    %v182 = vsel %vm150, %v132, 0
    %v185 = vsel %vm150, %v133, 0
    %v188 = vsel %vm150, %v134, 0
    %v191 = vsel %vm150, %v135, 0
    %v194 = vsel %vm150, %v136, 0
    %v197 = vsel %vm150, %v137, 0
    %199 = vmatprep.subr.bf16.mxu0 0
    %200 = vmatpush1.bf16.msra.mxu0 %v146
    %201 = vmatprep.subr.bf16.mxu0 0
    %202 = vmatpush1.bf16.msra.mxu0 %v147
    %203 = vmatprep.subr.bf16.mxu0 0
    %204 = vmatpush1.bf16.msra.mxu0 0
    %205 = vmatprep.subr.bf16.mxu0 0
    %206 = vmatpush1.bf16.msra.mxu0 0
    %207 = vmatprep.subr.bf16.mxu0 0
    %208 = vmatpush1.bf16.msra.mxu0 0
    %209 = vmatprep.subr.bf16.mxu0 0
    %210 = vmatpush1.bf16.msra.mxu0 0
    %211 = vmatprep.subr.bf16.mxu0 0
    %212 = vmatpush1.bf16.msra.mxu0 0
    %213 = vmatprep.subr.bf16.mxu0 0
    %214 = vmatpush1.bf16.msra.mxu0 0
    %215 = vmatprep.subr.bf16.mxu0 0
    %216 = vmatpush1.bf16.msra.mxu0 0
    %217 = vmatprep.subr.bf16.mxu0 0
    %218 = vmatpush1.bf16.msra.mxu0 0
    %219 = vmatprep.subr.bf16.mxu0 0
    %220 = vmatpush1.bf16.msra.mxu0 0
    %221 = vmatprep.subr.bf16.mxu0 0
    %222 = vmatpush1.bf16.msra.mxu0 0
    %223 = vmatprep.subr.bf16.mxu0 0
    %224 = vmatpush1.bf16.msra.mxu0 0
    %225 = vmatprep.subr.bf16.mxu0 0
    %226 = vmatpush1.bf16.msra.mxu0 0
    %227 = vmatprep.subr.bf16.mxu0 0
    %228 = vmatpush1.bf16.msra.mxu0 0
    %229 = vmatprep.subr.bf16.mxu0 0
    %230 = vmatpush1.bf16.msra.mxu0 0
    %231 = vmatprep.mubr.bf16.mxu0 0
    %232 = vmatmul.mubr.bf16.gmra.mrb[0].mxu0 %v152
    %v233 = vpop.f32.mrb[0].mxu0
    %v234 = vadd.f32 0.0, %v233
    %v235 = vpop.f32.mrb[0].mxu0
    %v236 = vpop.f32.mrb[0].mxu0
    %v237 = vadd.f32 0.0, %v236
    %v238 = vpop.f32.mrb[0].mxu0
    %239 = vmatprep.mubr.bf16.mxu0 0
    %240 = vmatmul.mubr.bf16.gmra.mrb[0].mxu0 %v155
    %v241 = vpop.f32.mrb[0].mxu0
    %v242 = vadd.f32 0.0, %v241
    %v243 = vpop.f32.mrb[0].mxu0
    %v244 = vpop.f32.mrb[0].mxu0
    %v245 = vadd.f32 0.0, %v244
    %v246 = vpop.f32.mrb[0].mxu0
    %247 = vmatprep.mubr.bf16.mxu0 0
    %248 = vmatmul.mubr.bf16.gmra.mrb[0].mxu0 %v158
    %v249 = vpop.f32.mrb[0].mxu0
    %v250 = vadd.f32 0.0, %v249
    %v251 = vpop.f32.mrb[0].mxu0
    %v252 = vpop.f32.mrb[0].mxu0
    %v253 = vadd.f32 0.0, %v252
    %v254 = vpop.f32.mrb[0].mxu0
    %255 = vmatprep.mubr.bf16.mxu0 0
    %256 = vmatmul.mubr.bf16.gmra.mrb[0].mxu0 %v161
    %v257 = vpop.f32.mrb[0].mxu0
    %v258 = vadd.f32 0.0, %v257
    %v259 = vpop.f32.mrb[0].mxu0
    %v260 = vpop.f32.mrb[0].mxu0
    %v261 = vadd.f32 0.0, %v260
    %v262 = vpop.f32.mrb[0].mxu0
    %263 = vmatprep.mubr.bf16.mxu0 0
    %264 = vmatmul.mubr.bf16.gmra.mrb[0].mxu0 %v164
    %v265 = vpop.f32.mrb[0].mxu0
    %v266 = vadd.f32 0.0, %v265
    %v267 = vpop.f32.mrb[0].mxu0
    %v268 = vpop.f32.mrb[0].mxu0
    %v269 = vadd.f32 0.0, %v268
    %v270 = vpop.f32.mrb[0].mxu0
    %271 = vmatprep.mubr.bf16.mxu0 0
    %272 = vmatmul.mubr.bf16.gmra.mrb[0].mxu0 %v167
    %v273 = vpop.f32.mrb[0].mxu0
    %v274 = vadd.f32 0.0, %v273
    %v275 = vpop.f32.mrb[0].mxu0
    %v276 = vpop.f32.mrb[0].mxu0
    %v277 = vadd.f32 0.0, %v276
    %v278 = vpop.f32.mrb[0].mxu0
    %279 = vmatprep.mubr.bf16.mxu0 0
    %280 = vmatmul.mubr.bf16.gmra.mrb[0].mxu0 %v170
    %v281 = vpop.f32.mrb[0].mxu0
    %v282 = vadd.f32 0.0, %v281
    %v283 = vpop.f32.mrb[0].mxu0
    %v284 = vpop.f32.mrb[0].mxu0
    %v285 = vadd.f32 0.0, %v284
    %v286 = vpop.f32.mrb[0].mxu0
    %287 = vmatprep.mubr.bf16.mxu0 0
    %288 = vmatmul.mubr.bf16.gmra.mrb[0].mxu0 %v173
    %v289 = vpop.f32.mrb[0].mxu0
    %v290 = vadd.f32 0.0, %v289
    %v291 = vpop.f32.mrb[0].mxu0
    %v292 = vpop.f32.mrb[0].mxu0
    %v293 = vadd.f32 0.0, %v292
    %v294 = vpop.f32.mrb[0].mxu0
    %295 = vmatprep.mubr.bf16.mxu0 0
    %296 = vmatmul.mubr.bf16.gmra.mrb[0].mxu0 %v176
    %v297 = vpop.f32.mrb[0].mxu0
    %v298 = vadd.f32 0.0, %v297
    %v299 = vpop.f32.mrb[0].mxu0
    %v300 = vpop.f32.mrb[0].mxu0
    %v301 = vadd.f32 0.0, %v300
    %v302 = vpop.f32.mrb[0].mxu0
    %303 = vmatprep.mubr.bf16.mxu0 0
    %304 = vmatmul.mubr.bf16.gmra.mrb[0].mxu0 %v179
    %v305 = vpop.f32.mrb[0].mxu0
    %v306 = vadd.f32 0.0, %v305
    %v307 = vpop.f32.mrb[0].mxu0
    %v308 = vpop.f32.mrb[0].mxu0
    %v309 = vadd.f32 0.0, %v308
    %v310 = vpop.f32.mrb[0].mxu0
    %311 = vmatprep.mubr.bf16.mxu0 0
    %312 = vmatmul.mubr.bf16.gmra.mrb[0].mxu0 %v182
    %v313 = vpop.f32.mrb[0].mxu0
    %v314 = vadd.f32 0.0, %v313
    %v315 = vpop.f32.mrb[0].mxu0
    %v316 = vpop.f32.mrb[0].mxu0
    %v317 = vadd.f32 0.0, %v316
    %v318 = vpop.f32.mrb[0].mxu0
    %319 = vmatprep.mubr.bf16.mxu0 0
    %320 = vmatmul.mubr.bf16.gmra.mrb[0].mxu0 %v185
    %v321 = vpop.f32.mrb[0].mxu0
    %v322 = vadd.f32 0.0, %v321
    %v323 = vpop.f32.mrb[0].mxu0
    %v324 = vpop.f32.mrb[0].mxu0
    %v325 = vadd.f32 0.0, %v324
    %v326 = vpop.f32.mrb[0].mxu0
    %327 = vmatprep.mubr.bf16.mxu0 0
    %328 = vmatmul.mubr.bf16.gmra.mrb[0].mxu0 %v188
    %v329 = vpop.f32.mrb[0].mxu0
    %v330 = vadd.f32 0.0, %v329
    %v331 = vpop.f32.mrb[0].mxu0
    %v332 = vpop.f32.mrb[0].mxu0
    %v333 = vadd.f32 0.0, %v332
    %v334 = vpop.f32.mrb[0].mxu0
    %335 = vmatprep.mubr.bf16.mxu0 0
    %336 = vmatmul.mubr.bf16.gmra.mrb[0].mxu0 %v191
    %v337 = vpop.f32.mrb[0].mxu0
    %v338 = vadd.f32 0.0, %v337
    %v339 = vpop.f32.mrb[0].mxu0
    %v340 = vpop.f32.mrb[0].mxu0
    %v341 = vadd.f32 0.0, %v340
    %v342 = vpop.f32.mrb[0].mxu0
    %343 = vmatprep.mubr.bf16.mxu0 0
    %344 = vmatmul.mubr.bf16.gmra.mrb[0].mxu0 %v194
    %v345 = vpop.f32.mrb[0].mxu0
    %v346 = vadd.f32 0.0, %v345
    %v347 = vpop.f32.mrb[0].mxu0
    %v348 = vpop.f32.mrb[0].mxu0
    %v349 = vadd.f32 0.0, %v348
    %v350 = vpop.f32.mrb[0].mxu0
    %351 = vmatprep.mubr.bf16.mxu0 0
    %352 = vmatmul.mubr.bf16.gmra.mrb[0].mxu0 %v197
    %v353 = vpop.f32.mrb[0].mxu0
    %v354 = vadd.f32 0.0, %v353
    %v355 = vpop.f32.mrb[0].mxu0
    %v356 = vpop.f32.mrb[0].mxu0
    %v357 = vadd.f32 0.0, %v356
    %v358 = vpop.f32.mrb[0].mxu0
    %359 = vdwg.mxu0
    %v360 = vld [vmem:[%s2] sm:$0x1]
    %v362 = vlaneseq
    %v363 = vshrl.u32 %v362, 7
    %v364 = vsub.s32 0, %v363
    %v365 = vrot.slane %v360, %v364
    %v367 = vmul.f32 %v234, %v365
    %v368 = vmul.f32 %v237, %v365
    %v369 = vmul.f32 %v242, %v365
    %v370 = vmul.f32 %v245, %v365
    %v371 = vmul.f32 %v250, %v365
    %v372 = vmul.f32 %v253, %v365
    %v373 = vmul.f32 %v258, %v365
    %v374 = vmul.f32 %v261, %v365
    %v375 = vmul.f32 %v266, %v365
    %v376 = vmul.f32 %v269, %v365
    %v377 = vmul.f32 %v274, %v365
    %v378 = vmul.f32 %v277, %v365
    %v379 = vmul.f32 %v282, %v365
    %v380 = vmul.f32 %v285, %v365
    %v381 = vmul.f32 %v290, %v365
    %v382 = vmul.f32 %v293, %v365
    %v383 = vmul.f32 %v298, %v365
    %v384 = vmul.f32 %v301, %v365
    %v385 = vmul.f32 %v306, %v365
    %v386 = vmul.f32 %v309, %v365
    %v387 = vmul.f32 %v314, %v365
    %v388 = vmul.f32 %v317, %v365
    %v389 = vmul.f32 %v322, %v365
    %v390 = vmul.f32 %v325, %v365
    %v391 = vmul.f32 %v330, %v365
    %v392 = vmul.f32 %v333, %v365
    %v393 = vmul.f32 %v338, %v365
    %v394 = vmul.f32 %v341, %v365
    %v395 = vmul.f32 %v346, %v365
    %v396 = vmul.f32 %v349, %v365
    %v397 = vmul.f32 %v354, %v365
    %v398 = vmul.f32 %v357, %v365
    %399 = vadd.xlane.f32.xlu0 %v367
    %v400 = vpop.xlane.xlu0 %399
    %401 = vadd.xlane.f32.xlu0 %v368
    %v402 = vpop.xlane.xlu0 %401
    %403 = vadd.xlane.f32.xlu0 %v369
    %v404 = vpop.xlane.xlu0 %403
    %405 = vadd.xlane.f32.xlu0 %v370
    %v406 = vpop.xlane.xlu0 %405
    %407 = vadd.xlane.f32.xlu0 %v371
    %v408 = vpop.xlane.xlu0 %407
    %409 = vadd.xlane.f32.xlu0 %v372
    %v410 = vpop.xlane.xlu0 %409
    %411 = vadd.xlane.f32.xlu0 %v373
    %v412 = vpop.xlane.xlu0 %411
    %413 = vadd.xlane.f32.xlu0 %v374
    %v414 = vpop.xlane.xlu0 %413
    %415 = vadd.xlane.f32.xlu0 %v375
    %v416 = vpop.xlane.xlu0 %415
    %417 = vadd.xlane.f32.xlu0 %v376
    %v418 = vpop.xlane.xlu0 %417
    %419 = vadd.xlane.f32.xlu0 %v377
    %v420 = vpop.xlane.xlu0 %419
    %421 = vadd.xlane.f32.xlu0 %v378
    %v422 = vpop.xlane.xlu0 %421
    %423 = vadd.xlane.f32.xlu0 %v379
    %v424 = vpop.xlane.xlu0 %423
    %425 = vadd.xlane.f32.xlu0 %v380
    %v426 = vpop.xlane.xlu0 %425
    %427 = vadd.xlane.f32.xlu0 %v381
    %v428 = vpop.xlane.xlu0 %427
    %429 = vadd.xlane.f32.xlu0 %v382
    %v430 = vpop.xlane.xlu0 %429
    %431 = vadd.xlane.f32.xlu0 %v383
    %v432 = vpop.xlane.xlu0 %431
    %433 = vadd.xlane.f32.xlu0 %v384
    %v434 = vpop.xlane.xlu0 %433
    %435 = vadd.xlane.f32.xlu0 %v385
    %v436 = vpop.xlane.xlu0 %435
    %437 = vadd.xlane.f32.xlu0 %v386
    %v438 = vpop.xlane.xlu0 %437
    %439 = vadd.xlane.f32.xlu0 %v387
    %v440 = vpop.xlane.xlu0 %439
    %441 = vadd.xlane.f32.xlu0 %v388
    %v442 = vpop.xlane.xlu0 %441
    %443 = vadd.xlane.f32.xlu0 %v389
    %v444 = vpop.xlane.xlu0 %443
    %445 = vadd.xlane.f32.xlu0 %v390
    %v446 = vpop.xlane.xlu0 %445
    %447 = vadd.xlane.f32.xlu0 %v391
    %v448 = vpop.xlane.xlu0 %447
    %449 = vadd.xlane.f32.xlu0 %v392
    %v450 = vpop.xlane.xlu0 %449
    %451 = vadd.xlane.f32.xlu0 %v393
    %v452 = vpop.xlane.xlu0 %451
    %453 = vadd.xlane.f32.xlu0 %v394
    %v454 = vpop.xlane.xlu0 %453
    %455 = vadd.xlane.f32.xlu0 %v395
    %v456 = vpop.xlane.xlu0 %455
    %457 = vadd.xlane.f32.xlu0 %v396
    %v458 = vpop.xlane.xlu0 %457
    %459 = vadd.xlane.f32.xlu0 %v397
    %v460 = vpop.xlane.xlu0 %459
    %461 = vadd.xlane.f32.xlu0 %v398
    %v462 = vpop.xlane.xlu0 %461
    %vm463 = vcmask 7168
    %464 = vst.msk [vmem:[%s5] sm:$0xff] %vm463, %v400
    %465 = vst.msk [vmem:[%s5 + $0x8] sm:$0xff] %vm463, %v402
    %466 = vst.msk [vmem:[%s5 + $0x10] sm:$0xff] %vm463, %v404
    %467 = vst.msk [vmem:[%s5 + $0x18] sm:$0xff] %vm463, %v406
    %468 = vst.msk [vmem:[%s5 + $0x20] sm:$0xff] %vm463, %v408
    %469 = vst.msk [vmem:[%s5 + $0x28] sm:$0xff] %vm463, %v410
    %470 = vst.msk [vmem:[%s5 + $0x30] sm:$0xff] %vm463, %v412
    %471 = vst.msk [vmem:[%s5 + $0x38] sm:$0xff] %vm463, %v414
    %472 = vst.msk [vmem:[%s5 + $0x40] sm:$0xff] %vm463, %v416
    %473 = vst.msk [vmem:[%s5 + $0x48] sm:$0xff] %vm463, %v418
    %474 = vst.msk [vmem:[%s5 + $0x50] sm:$0xff] %vm463, %v420
    %475 = vst.msk [vmem:[%s5 + $0x58] sm:$0xff] %vm463, %v422
    %476 = vst.msk [vmem:[%s5 + $0x60] sm:$0xff] %vm463, %v424
    %477 = vst.msk [vmem:[%s5 + $0x68] sm:$0xff] %vm463, %v426
    %478 = vst.msk [vmem:[%s5 + $0x70] sm:$0xff] %vm463, %v428
    %479 = vst.msk [vmem:[%s5 + $0x78] sm:$0xff] %vm463, %v430
    %480 = vst.msk [vmem:[%s5 + $0x80] sm:$0xff] %vm463, %v432
    %481 = vst.msk [vmem:[%s5 + $0x88] sm:$0xff] %vm463, %v434
    %482 = vst.msk [vmem:[%s5 + $0x90] sm:$0xff] %vm463, %v436
    %483 = vst.msk [vmem:[%s5 + $0x98] sm:$0xff] %vm463, %v438
    %484 = vst.msk [vmem:[%s5 + $0xa0] sm:$0xff] %vm463, %v440
    %485 = vst.msk [vmem:[%s5 + $0xa8] sm:$0xff] %vm463, %v442
    %486 = vst.msk [vmem:[%s5 + $0xb0] sm:$0xff] %vm463, %v444
    %487 = vst.msk [vmem:[%s5 + $0xb8] sm:$0xff] %vm463, %v446
    %488 = vst.msk [vmem:[%s5 + $0xc0] sm:$0xff] %vm463, %v448
    %489 = vst.msk [vmem:[%s5 + $0xc8] sm:$0xff] %vm463, %v450
    %490 = vst.msk [vmem:[%s5 + $0xd0] sm:$0xff] %vm463, %v452
    %491 = vst.msk [vmem:[%s5 + $0xd8] sm:$0xff] %vm463, %v454
    %492 = vst.msk [vmem:[%s5 + $0xe0] sm:$0xff] %vm463, %v456
    %493 = vst.msk [vmem:[%s5 + $0xe8] sm:$0xff] %vm463, %v458
    %494 = vst.msk [vmem:[%s5 + $0xf0] sm:$0xff] %vm463, %v460
    %495 = vst.msk [vmem:[%s5 + $0xf8] sm:$0xff] %vm463, %v462
    %v496 = vld [vmem:[%s3] sm:$0x1]
    %v498 = vlaneseq
    %v499 = vshrl.u32 %v498, 7
    %v500 = vsub.s32 0, %v499
    %v501 = vrot.slane %v496, %v500
    %v503 = vmul.f32 %v234, %v501
    %v504 = vmul.f32 %v237, %v501
    %v505 = vmul.f32 %v242, %v501
    %v506 = vmul.f32 %v245, %v501
    %v507 = vmul.f32 %v250, %v501
    %v508 = vmul.f32 %v253, %v501
    %v509 = vmul.f32 %v258, %v501
    %v510 = vmul.f32 %v261, %v501
    %v511 = vmul.f32 %v266, %v501
    %v512 = vmul.f32 %v269, %v501
    %v513 = vmul.f32 %v274, %v501
    %v514 = vmul.f32 %v277, %v501
    %v515 = vmul.f32 %v282, %v501
    %v516 = vmul.f32 %v285, %v501
    %v517 = vmul.f32 %v290, %v501
    %v518 = vmul.f32 %v293, %v501
    %v519 = vmul.f32 %v298, %v501
    %v520 = vmul.f32 %v301, %v501
    %v521 = vmul.f32 %v306, %v501
    %v522 = vmul.f32 %v309, %v501
    %v523 = vmul.f32 %v314, %v501
    %v524 = vmul.f32 %v317, %v501
    %v525 = vmul.f32 %v322, %v501
    %v526 = vmul.f32 %v325, %v501
    %v527 = vmul.f32 %v330, %v501
    %v528 = vmul.f32 %v333, %v501
    %v529 = vmul.f32 %v338, %v501
    %v530 = vmul.f32 %v341, %v501
    %v531 = vmul.f32 %v346, %v501
    %v532 = vmul.f32 %v349, %v501
    %v533 = vmul.f32 %v354, %v501
    %v534 = vmul.f32 %v357, %v501
    %535 = vadd.xlane.f32.xlu0 %v503
    %v536 = vpop.xlane.xlu0 %535
    %537 = vadd.xlane.f32.xlu0 %v504
    %v538 = vpop.xlane.xlu0 %537
    %539 = vadd.xlane.f32.xlu0 %v505
    %v540 = vpop.xlane.xlu0 %539
    %541 = vadd.xlane.f32.xlu0 %v506
    %v542 = vpop.xlane.xlu0 %541
    %543 = vadd.xlane.f32.xlu0 %v507
    %v544 = vpop.xlane.xlu0 %543
    %545 = vadd.xlane.f32.xlu0 %v508
    %v546 = vpop.xlane.xlu0 %545
    %547 = vadd.xlane.f32.xlu0 %v509
    %v548 = vpop.xlane.xlu0 %547
    %549 = vadd.xlane.f32.xlu0 %v510
    %v550 = vpop.xlane.xlu0 %549
    %551 = vadd.xlane.f32.xlu0 %v511
    %v552 = vpop.xlane.xlu0 %551
    %553 = vadd.xlane.f32.xlu0 %v512
    %v554 = vpop.xlane.xlu0 %553
    %555 = vadd.xlane.f32.xlu0 %v513
    %v556 = vpop.xlane.xlu0 %555
    %557 = vadd.xlane.f32.xlu0 %v514
    %v558 = vpop.xlane.xlu0 %557
    %559 = vadd.xlane.f32.xlu0 %v515
    %v560 = vpop.xlane.xlu0 %559
    %561 = vadd.xlane.f32.xlu0 %v516
    %v562 = vpop.xlane.xlu0 %561
    %563 = vadd.xlane.f32.xlu0 %v517
    %v564 = vpop.xlane.xlu0 %563
    %565 = vadd.xlane.f32.xlu0 %v518
    %v566 = vpop.xlane.xlu0 %565
    %567 = vadd.xlane.f32.xlu0 %v519
    %v568 = vpop.xlane.xlu0 %567
    %569 = vadd.xlane.f32.xlu0 %v520
    %v570 = vpop.xlane.xlu0 %569
    %571 = vadd.xlane.f32.xlu0 %v521
    %v572 = vpop.xlane.xlu0 %571
    %573 = vadd.xlane.f32.xlu0 %v522
    %v574 = vpop.xlane.xlu0 %573
    %575 = vadd.xlane.f32.xlu0 %v523
    %v576 = vpop.xlane.xlu0 %575
    %577 = vadd.xlane.f32.xlu0 %v524
    %v578 = vpop.xlane.xlu0 %577
    %579 = vadd.xlane.f32.xlu0 %v525
    %v580 = vpop.xlane.xlu0 %579
    %581 = vadd.xlane.f32.xlu0 %v526
    %v582 = vpop.xlane.xlu0 %581
    %583 = vadd.xlane.f32.xlu0 %v527
    %v584 = vpop.xlane.xlu0 %583
    %585 = vadd.xlane.f32.xlu0 %v528
    %v586 = vpop.xlane.xlu0 %585
    %587 = vadd.xlane.f32.xlu0 %v529
    %v588 = vpop.xlane.xlu0 %587
    %589 = vadd.xlane.f32.xlu0 %v530
    %v590 = vpop.xlane.xlu0 %589
    %591 = vadd.xlane.f32.xlu0 %v531
    %v592 = vpop.xlane.xlu0 %591
    %593 = vadd.xlane.f32.xlu0 %v532
    %v594 = vpop.xlane.xlu0 %593
    %595 = vadd.xlane.f32.xlu0 %v533
    %v596 = vpop.xlane.xlu0 %595
    %597 = vadd.xlane.f32.xlu0 %v534
    %v598 = vpop.xlane.xlu0 %597
    %599 = vst.msk [vmem:[%s6] sm:$0xff] %vm463, %v536
    %600 = vst.msk [vmem:[%s6 + $0x8] sm:$0xff] %vm463, %v538
    %601 = vst.msk [vmem:[%s6 + $0x10] sm:$0xff] %vm463, %v540
    %602 = vst.msk [vmem:[%s6 + $0x18] sm:$0xff] %vm463, %v542
    %603 = vst.msk [vmem:[%s6 + $0x20] sm:$0xff] %vm463, %v544
    %604 = vst.msk [vmem:[%s6 + $0x28] sm:$0xff] %vm463, %v546
    %605 = vst.msk [vmem:[%s6 + $0x30] sm:$0xff] %vm463, %v548
    %606 = vst.msk [vmem:[%s6 + $0x38] sm:$0xff] %vm463, %v550
    %607 = vst.msk [vmem:[%s6 + $0x40] sm:$0xff] %vm463, %v552
    %608 = vst.msk [vmem:[%s6 + $0x48] sm:$0xff] %vm463, %v554
    %609 = vst.msk [vmem:[%s6 + $0x50] sm:$0xff] %vm463, %v556
    %610 = vst.msk [vmem:[%s6 + $0x58] sm:$0xff] %vm463, %v558
    %611 = vst.msk [vmem:[%s6 + $0x60] sm:$0xff] %vm463, %v560
    %612 = vst.msk [vmem:[%s6 + $0x68] sm:$0xff] %vm463, %v562
    %613 = vst.msk [vmem:[%s6 + $0x70] sm:$0xff] %vm463, %v564
    %614 = vst.msk [vmem:[%s6 + $0x78] sm:$0xff] %vm463, %v566
    %615 = vst.msk [vmem:[%s6 + $0x80] sm:$0xff] %vm463, %v568
    %616 = vst.msk [vmem:[%s6 + $0x88] sm:$0xff] %vm463, %v570
    %617 = vst.msk [vmem:[%s6 + $0x90] sm:$0xff] %vm463, %v572
    %618 = vst.msk [vmem:[%s6 + $0x98] sm:$0xff] %vm463, %v574
    %619 = vst.msk [vmem:[%s6 + $0xa0] sm:$0xff] %vm463, %v576
    %620 = vst.msk [vmem:[%s6 + $0xa8] sm:$0xff] %vm463, %v578
    %621 = vst.msk [vmem:[%s6 + $0xb0] sm:$0xff] %vm463, %v580
    %622 = vst.msk [vmem:[%s6 + $0xb8] sm:$0xff] %vm463, %v582
    %623 = vst.msk [vmem:[%s6 + $0xc0] sm:$0xff] %vm463, %v584
    %624 = vst.msk [vmem:[%s6 + $0xc8] sm:$0xff] %vm463, %v586
    %625 = vst.msk [vmem:[%s6 + $0xd0] sm:$0xff] %vm463, %v588
    %626 = vst.msk [vmem:[%s6 + $0xd8] sm:$0xff] %vm463, %v590
    %627 = vst.msk [vmem:[%s6 + $0xe0] sm:$0xff] %vm463, %v592
    %628 = vst.msk [vmem:[%s6 + $0xe8] sm:$0xff] %vm463, %v594
    %629 = vst.msk [vmem:[%s6 + $0xf0] sm:$0xff] %vm463, %v596
    %630 = vst.msk [vmem:[%s6 + $0xf8] sm:$0xff] %vm463, %v598
    %v631 = vpack.c.bf16 %v237, %v234
    %v632 = vpack.c.bf16 %v245, %v242
    %v633 = vpack.c.bf16 %v253, %v250
    %v634 = vpack.c.bf16 %v261, %v258
    %v635 = vpack.c.bf16 %v269, %v266
    %v636 = vpack.c.bf16 %v277, %v274
    %v637 = vpack.c.bf16 %v285, %v282
    %v638 = vpack.c.bf16 %v293, %v290
    %v639 = vpack.c.bf16 %v301, %v298
    %v640 = vpack.c.bf16 %v309, %v306
    %v641 = vpack.c.bf16 %v317, %v314
    %v642 = vpack.c.bf16 %v325, %v322
    %v643 = vpack.c.bf16 %v333, %v330
    %v644 = vpack.c.bf16 %v341, %v338
    %v645 = vpack.c.bf16 %v349, %v346
    %v646 = vpack.c.bf16 %v357, %v354
    %v663 = vunpack.c.l.b16 %v631
    %v664 = vunpack.c.h.b16 %v631
    %v665 = vunpack.c.l.b16 %v632
    %v666 = vunpack.c.h.b16 %v632
    %v667 = vunpack.c.l.b16 %v633
    %v668 = vunpack.c.h.b16 %v633
    %v669 = vunpack.c.l.b16 %v634
    %v670 = vunpack.c.h.b16 %v634
    %v671 = vunpack.c.l.b16 %v635
    %v672 = vunpack.c.h.b16 %v635
    %v673 = vunpack.c.l.b16 %v636
    %v674 = vunpack.c.h.b16 %v636
    %v675 = vunpack.c.l.b16 %v637
    %v676 = vunpack.c.h.b16 %v637
    %v677 = vunpack.c.l.b16 %v638
    %v678 = vunpack.c.h.b16 %v638
    %v679 = vunpack.c.l.b16 %v639
    %v680 = vunpack.c.h.b16 %v639
    %v681 = vunpack.c.l.b16 %v640
    %v682 = vunpack.c.h.b16 %v640
    %v683 = vunpack.c.l.b16 %v641
    %v684 = vunpack.c.h.b16 %v641
    %v685 = vunpack.c.l.b16 %v642
    %v686 = vunpack.c.h.b16 %v642
    %v687 = vunpack.c.l.b16 %v643
    %v688 = vunpack.c.h.b16 %v643
    %v689 = vunpack.c.l.b16 %v644
    %v690 = vunpack.c.h.b16 %v644
    %v691 = vunpack.c.l.b16 %v645
    %v692 = vunpack.c.h.b16 %v645
    %v693 = vunpack.c.l.b16 %v646
    %v694 = vunpack.c.h.b16 %v646
    %v695 = vpack.c.b16 %v663, %v663
    %v696 = vpack.c.b16 %v664, %v664
    %v697 = vpack.c.b16 %v665, %v665
    %v698 = vpack.c.b16 %v666, %v666
    %v699 = vpack.c.b16 %v667, %v667
    %v700 = vpack.c.b16 %v668, %v668
    %v701 = vpack.c.b16 %v669, %v669
    %v702 = vpack.c.b16 %v670, %v670
    %v703 = vpack.c.b16 %v671, %v671
    %v704 = vpack.c.b16 %v672, %v672
    %v705 = vpack.c.b16 %v673, %v673
    %v706 = vpack.c.b16 %v674, %v674
    %v707 = vpack.c.b16 %v675, %v675
    %v708 = vpack.c.b16 %v676, %v676
    %v709 = vpack.c.b16 %v677, %v677
    %v710 = vpack.c.b16 %v678, %v678
    %v711 = vpack.c.b16 %v679, %v679
    %v712 = vpack.c.b16 %v680, %v680
    %v713 = vpack.c.b16 %v681, %v681
    %v714 = vpack.c.b16 %v682, %v682
    %v715 = vpack.c.b16 %v683, %v683
    %v716 = vpack.c.b16 %v684, %v684
    %v717 = vpack.c.b16 %v685, %v685
    %v718 = vpack.c.b16 %v686, %v686
    %v719 = vpack.c.b16 %v687, %v687
    %v720 = vpack.c.b16 %v688, %v688
    %v721 = vpack.c.b16 %v689, %v689
    %v722 = vpack.c.b16 %v690, %v690
    %v723 = vpack.c.b16 %v691, %v691
    %v724 = vpack.c.b16 %v692, %v692
    %v725 = vpack.c.b16 %v693, %v693
    %v726 = vpack.c.b16 %v694, %v694
    %759 = vst [vmem:[#allocation2] sm:$0xf] %v695
    %760 = vst [vmem:[#allocation2 + $0x4] sm:$0xf] %v696
    %761 = vst [vmem:[#allocation2 + $0x8] sm:$0xf] %v697
    %762 = vst [vmem:[#allocation2 + $0xc] sm:$0xf] %v698
    %763 = vst [vmem:[#allocation2 + $0x10] sm:$0xf] %v699
    %764 = vst [vmem:[#allocation2 + $0x14] sm:$0xf] %v700
    %765 = vst [vmem:[#allocation2 + $0x18] sm:$0xf] %v701
    %766 = vst [vmem:[#allocation2 + $0x1c] sm:$0xf] %v702
    %767 = vst [vmem:[#allocation2 + $0x20] sm:$0xf] %v703
    %768 = vst [vmem:[#allocation2 + $0x24] sm:$0xf] %v704
    %769 = vst [vmem:[#allocation2 + $0x28] sm:$0xf] %v705
    %770 = vst [vmem:[#allocation2 + $0x2c] sm:$0xf] %v706
    %771 = vst [vmem:[#allocation2 + $0x30] sm:$0xf] %v707
    %772 = vst [vmem:[#allocation2 + $0x34] sm:$0xf] %v708
    %773 = vst [vmem:[#allocation2 + $0x38] sm:$0xf] %v709
    %774 = vst [vmem:[#allocation2 + $0x3c] sm:$0xf] %v710
    %775 = vst [vmem:[#allocation2 + $0x40] sm:$0xf] %v711
    %776 = vst [vmem:[#allocation2 + $0x44] sm:$0xf] %v712
    %777 = vst [vmem:[#allocation2 + $0x48] sm:$0xf] %v713
    %778 = vst [vmem:[#allocation2 + $0x4c] sm:$0xf] %v714
    %779 = vst [vmem:[#allocation2 + $0x50] sm:$0xf] %v715
    %780 = vst [vmem:[#allocation2 + $0x54] sm:$0xf] %v716
    %781 = vst [vmem:[#allocation2 + $0x58] sm:$0xf] %v717
    %782 = vst [vmem:[#allocation2 + $0x5c] sm:$0xf] %v718
    %783 = vst [vmem:[#allocation2 + $0x60] sm:$0xf] %v719
    %784 = vst [vmem:[#allocation2 + $0x64] sm:$0xf] %v720
    %785 = vst [vmem:[#allocation2 + $0x68] sm:$0xf] %v721
    %786 = vst [vmem:[#allocation2 + $0x6c] sm:$0xf] %v722
    %787 = vst [vmem:[#allocation2 + $0x70] sm:$0xf] %v723
    %788 = vst [vmem:[#allocation2 + $0x74] sm:$0xf] %v724
    %789 = vst [vmem:[#allocation2 + $0x78] sm:$0xf] %v725
    %790 = vst [vmem:[#allocation2 + $0x7c] sm:$0xf] %v726
    // Predicated region
    $region18: #{tpu_custom_call.1} parent=1 // pred_check
      _
    $region19: #{tpu_custom_call.1} parent=1 // pred_check_branch
      %792 = sbr.rel (0) target = $region21
    $region20: #{tpu_custom_call.1} parent=1 // pred_region
      %s794 = ssub.s32 2048, 2048
      %795 = vsyncadd [#allocation3], %s794
      %s796 = sshll.u32 [#allocation2], 4
      %s797 = int_to_ptr.vmem [resolvable:$true] %s796
      %802 = dma.vmem_to_hbm [thread:$0]  %s797, 2048, %s4, [#allocation3], 64, 64, 4
    $region21: #{tpu_custom_call.1} parent=1 // pred_fallthru
      _
    // Predicated region
    $region22: #{tpu_custom_call.1} parent=1 // pred_check
      _
    $region23: #{tpu_custom_call.1} parent=1 // pred_check_branch
      %804 = sbr.rel (0) target = $region25
    $region24: #{tpu_custom_call.1} parent=1 // pred_region
      _
    $region25: #{tpu_custom_call.1} parent=1 // pred_fallthru
      _
    // Predicated region
    $region26: #{tpu_custom_call.1} parent=1 // pred_check
      _
    $region27: #{tpu_custom_call.1} parent=1 // pred_check_branch
      %806 = sbr.rel (0) target = $region29
    $region28: #{tpu_custom_call.1} parent=1 // pred_region
      _
    $region29: #{tpu_custom_call.1} parent=1 // pred_fallthru
      _
    // Predicated region
    $region30: #{tpu_custom_call.1} parent=1 // pred_check
      _
    $region31: #{tpu_custom_call.1} parent=1 // pred_check_branch
      %808 = sbr.rel (0) target = $region33
    $region32: #{tpu_custom_call.1} parent=1 // pred_region
      %809 = dma.done [#allocation3], 2048
    $region33: #{tpu_custom_call.1} parent=1 // pred_fallthru
      _
    // Predicated region
    $region34: #{tpu_custom_call.1} parent=1 // pred_check
      _
    $region35: #{tpu_custom_call.1} parent=1 // pred_check_branch
      %811 = sbr.rel (0) target = $region37
    $region36: #{tpu_custom_call.1} parent=1 // pred_region
      _
    $region37: #{tpu_custom_call.1} parent=1 // pred_fallthru
      _
    // Predicated region
    $region38: #{tpu_custom_call.1} parent=1 // pred_check
      _
    $region39: #{tpu_custom_call.1} parent=1 // pred_check_branch
      %813 = sbr.rel (0) target = $region41
    $region40: #{tpu_custom_call.1} parent=1 // pred_region
      _
    $region41: #{tpu_custom_call.1} parent=1 // pred_fallthru
      _
    %814 = vsyncpa [#allocation3], 1

</llo_original>
